<compile_context>
chip_gen: v5e
topology: v5e:2x2
jax: 0.10.0
libtpu: 0.0.40
codegen_flags: <defaults>
</compile_context>

<pallas_src>
import math

import jax
import jax.numpy as jnp
from jax.experimental import pallas as pl
from jax.experimental.pallas import tpu as pltpu

# ----- module constants ------------------------------------------------------
REDEFINED_CALIBRATED_REFRACTORY_PERIOD_FACTOR = 0.999
MIN_SCALED_SHIFTED_SIGMOID_GRAD_MAGNITUDE = 1.0e-4

_LANE_WIDTHS = (4096, 2048, 1024, 512, 256, 128)  # widest lane-dense view first
_TARGET_BLOCK_BYTES = 2 << 20   # ~2 MiB per buffer -> near HBM roofline
_MIN_GRID_STEPS = 8             # keep in/out DMA engines concurrently busy
_MIN_PALLAS_ELEMS = 1 << 21     # below ~2M elems the fuseable XLA add wins


# ----- parameter construction (mirrors __init__ + clamp_refractory_period) ----
def compute_refractory_period(calibrated_refractory_period, max_refractory_period):
    """Host-side evaluation of the parametrized refractory period (python float).

    Mirrors RefractoryPeriod.__init__ (right_inverse of ScaledShiftedSigmoid),
    clamp_refractory_period(), and the forward parametrization.  Grid-invariant
    scalar math, hoisted out of the kernel entirely.
    """
    if not (0.0 <= calibrated_refractory_period < max_refractory_period):
        calibrated_refractory_period = (
            REDEFINED_CALIBRATED_REFRACTORY_PERIOD_FACTOR * max_refractory_period
        )
    q = MIN_SCALED_SHIFTED_SIGMOID_GRAD_MAGNITUDE
    max_scaled_logit_magnitude = abs(math.log(q / (1.0 - q)))   # |logit(1e-4)|
    p = calibrated_refractory_period / max_refractory_period
    # scaled_logit = (max * logit(p)) / max = logit(p).  PyTorch's logit(0) is
    # -inf, which the clamp below maps to -max_scaled_logit_magnitude; mirror
    # that directly instead of raising a math domain error.
    if p <= 0.0:
        scaled_logit = -max_scaled_logit_magnitude
    else:
        scaled_logit = math.log(p / (1.0 - p))
    clamped_scaled_logit = min(
        max(scaled_logit, -max_scaled_logit_magnitude), max_scaled_logit_magnitude
    )
    # forward parametrization: rp = max * sigmoid(clamped_logit / max)
    return max_refractory_period / (1.0 + math.exp(-clamped_scaled_logit))


# ----- Pallas kernel ----------------------------------------------------------
def _refractory_kernel(rp_ref, ts_ref, out_ref):
    # rp_ref: SMEM scalar [1] holding the already-computed refractory period.
    # One scalar-broadcast vadd per vreg -> purely HBM/DMA bound.
    out_ref[...] = ts_ref[...] + rp_ref[0]


def _pick_lane_width(n):
    for w in _LANE_WIDTHS:
        if n % w == 0:
            return w
    return None


def _pick_tile_rows(rows, lane_width, dtype):
    itemsize = jnp.dtype(dtype).itemsize
    sublane = max(8, 32 // itemsize)          # 8 f32 / 16 bf16 / 32 int8-fp8
    if rows <= sublane:
        return rows                            # single full-extent block
    max_rows_by_bytes = max(sublane, _TARGET_BLOCK_BYTES // (lane_width * itemsize))
    max_rows_by_steps = max(sublane, rows // _MIN_GRID_STEPS)
    tile = min(rows, max_rows_by_bytes, max_rows_by_steps)
    tile = max(sublane, (tile // sublane) * sublane)
    # v7x: prefer an even grid-step count so both TensorCores finish together.
    steps = pl.cdiv(rows, tile)
    if steps > 1 and steps % 2 == 1:
        alt = pl.cdiv(rows, steps + 1)
        alt = max(sublane, pl.cdiv(alt, sublane) * sublane)
        if pl.cdiv(rows, alt) % 2 == 0:
            tile = alt
    return tile


# ----- wrapper ----------------------------------------------------------------
def refractory_period_forward(input_event, refractory_period, *,
                              force_pallas=False, donate_start_ts=False):
    """RefractoryPeriod.forward: delay start_ts by the refractory period.

    `refractory_period` is the scalar produced by compute_refractory_period().

    force_pallas is ignored when N is not a multiple of 128 (no lane-dense 2-D
    view exists); the fuseable XLA add is used instead.
    donate_start_ts=True aliases the input start_ts buffer to the output
    (caller must not read input_event['start_ts'] afterwards).
    """
    start_ts = input_event["start_ts"]
    assert start_ts.ndim == 1
    if not jnp.issubdtype(start_ts.dtype, jnp.floating):
        raise TypeError(
            "start_ts must have a floating dtype; integer timestamps would "
            "silently truncate a sub-unit refractory period to 0."
        )
    n = start_ts.shape[0]
    rp = jnp.asarray(refractory_period, dtype=start_ts.dtype)

    lane_w = _pick_lane_width(n)
    use_pallas = (force_pallas or n >= _MIN_PALLAS_ELEMS) and (lane_w is not None)

    if not use_pallas:
        # Tiny / lane-ragged payloads: XLA's fused scalar-broadcast add is at
        # roofline already and can fuse with producer/consumer event ops.
        out_ts = start_ts + rp
    else:
        rows = n // lane_w
        tile_rows = _pick_tile_rows(rows, lane_w, start_ts.dtype)
        grid = (pl.cdiv(rows, tile_rows),)       # ragged last block is masked
        ts2d = start_ts.reshape(rows, lane_w)    # free (contiguous) reshape
        rp_smem = jnp.full((1,), rp, dtype=ts2d.dtype)

        itemsize = jnp.dtype(ts2d.dtype).itemsize
        block_bytes = tile_rows * lane_w * itemsize
        vmem_needed = 4 * block_bytes            # in + out, double-buffered
        vmem_limit = None
        if vmem_needed > (12 << 20):             # headroom under v5e's 16 MiB default
            vmem_limit = min(vmem_needed + (4 << 20), 48 << 20)

        out2d = pl.pallas_call(
            _refractory_kernel,
            out_shape=jax.ShapeDtypeStruct(ts2d.shape, ts2d.dtype),
            grid=grid,
            in_specs=[
                pl.BlockSpec(memory_space=pltpu.MemorySpace.SMEM),    # rp scalar
                pl.BlockSpec((tile_rows, lane_w), lambda i: (i, 0)),
            ],
            out_specs=pl.BlockSpec((tile_rows, lane_w), lambda i: (i, 0)),
            compiler_params=pltpu.CompilerParams(
                dimension_semantics=("parallel",),
                vmem_limit_bytes=vmem_limit,
            ),
            input_output_aliases=({1: 0} if donate_start_ts else {}),
        )(rp_smem, ts2d)
        out_ts = out2d.reshape(n)                # free (contiguous) reshape

    output_event = dict(input_event)   # EasyDict copy -> plain dict copy
    output_event["start_ts"] = out_ts
    return output_event


# ----- demo / self-test -------------------------------------------------------
if __name__ == "__main__":
    key = jax.random.PRNGKey(0)
    k_ts, k_end = jax.random.split(key)

    # 38400 events: multiple of 128 (Pallas path), not a tile multiple, so the
    # ragged-last-block masking is exercised.  Small enough for a quick demo.
    num_events = 300 * 128

    start_ts = jax.random.uniform(k_ts, (num_events,), jnp.float32, 0.0, 1.0)
    end_ts = start_ts + jax.random.uniform(k_end, (num_events,), jnp.float32, 0.0, 0.01)
    input_event = {"start_ts": start_ts, "end_ts": end_ts}

    # deterministic "camera calibration": 0.5 ms calibrated, 2 ms max
    rp = compute_refractory_period(
        calibrated_refractory_period=5.0e-4, max_refractory_period=2.0e-3
    )
    ref_ts = start_ts + jnp.float32(rp)

    # --- Pallas path ---
    out = refractory_period_forward(input_event, rp, force_pallas=True)
    jax.block_until_ready(out["start_ts"])
    assert out["start_ts"].shape == start_ts.shape
    assert out["start_ts"].dtype == start_ts.dtype
    assert jnp.allclose(out["start_ts"], ref_ts, rtol=1e-6, atol=1e-7)
    assert jnp.array_equal(out["end_ts"], input_event["end_ts"])   # passthrough

    # --- aliased (donated start_ts) Pallas path ---
    ev_donate = {"start_ts": start_ts + 0.0, "end_ts": end_ts}     # fresh buffer
    out_d = refractory_period_forward(
        ev_donate, rp, force_pallas=True, donate_start_ts=True
    )
    jax.block_until_ready(out_d["start_ts"])
    assert jnp.allclose(out_d["start_ts"], ref_ts, rtol=1e-6, atol=1e-7)

    # --- small-N fuseable XLA fallback ---
    small = {"start_ts": start_ts[:1000], "end_ts": end_ts[:1000]}
    out_s = refractory_period_forward(small, rp)
    assert jnp.allclose(
        out_s["start_ts"], start_ts[:1000] + jnp.float32(rp), rtol=1e-6, atol=1e-7
    )

    # --- calibrated == 0 no longer raises (logit(0) clamped, matching PyTorch) ---
    rp0 = compute_refractory_period(0.0, 2.0e-3)
    assert 0.0 < rp0 < 2.0e-3

    print("KERNEL_OK")
</pallas_src>

<mosaic_0001>
module attributes {stable_mosaic.version = 11 : i64} {
  func.func @_refractory_kernel(%arg0: i32, %arg1: memref<1xf32, #tpu.memory_space<smem>>, %arg2: memref<8x512xf32, #tpu.memory_space<vmem>>, %arg3: memref<8x512xf32, #tpu.memory_space<vmem>>) attributes {dimension_semantics = [#tpu.dimension_semantics<parallel>], iteration_bounds = array<i64: 10>, scalar_prefetch = 0 : i64, scratch_operands = 0 : i64, tpu.core_type = #tpu.core_type<tc>, window_params = [{transform_indices = @transform_0, window_bounds = array<i64: 1>}, {transform_indices = @transform_1, window_bounds = array<i64: 8, 512>}, {transform_indices = @transform_2, window_bounds = array<i64: 8, 512>}]} {
    %c0 = arith.constant 0 : index
    %c0_0 = arith.constant 0 : index
    %0 = vector.load %arg2[%c0, %c0_0] : memref<8x512xf32, #tpu.memory_space<vmem>>, vector<8x512xf32>
    %c0_1 = arith.constant 0 : index
    %1 = memref.load %arg1[%c0_1] : memref<1xf32, #tpu.memory_space<smem>>
    %2 = vector.broadcast %1 : f32 to vector<8x512xf32>
    %3 = arith.addf %0, %2 : vector<8x512xf32>
    %c0_2 = arith.constant 0 : index
    %c0_3 = arith.constant 0 : index
    %4 = vector.load %arg3[%c0_2, %c0_3] : memref<8x512xf32, #tpu.memory_space<vmem>>, vector<8x512xf32>
    tpu.vector_store %arg3[%c0_2, %c0_3], %3 {strides = array<i32>} : memref<8x512xf32, #tpu.memory_space<vmem>>, vector<8x512xf32>,
    return
  }
  func.func @transform_0(%arg0: i32) -> i32 {
    %c0_i32 = arith.constant 0 : i32
    %c0_i32_0 = arith.constant 0 : i32
    return %c0_i32 : i32
  }
  func.func @transform_1(%arg0: i32) -> (i32, i32) {
    %c0_i32 = arith.constant 0 : i32
    %c0_i32_0 = arith.constant 0 : i32
    return %arg0, %c0_i32 : i32, i32
  }
  func.func @transform_2(%arg0: i32) -> (i32, i32) {
    %c0_i32 = arith.constant 0 : i32
    %c0_i32_0 = arith.constant 0 : i32
    return %arg0, %c0_i32 : i32, i32
  }
}

</mosaic_0001>

<llo_original>
// kernel: tpu_custom_call.1
$region0: #{tpu_custom_call.1}
  #allocation0 [shape = 'u32[]', space=smem, size = 0x4, offset = 0x4, fixed_abs, tag = 'smem constant byte address 0x4 - core index']
  #allocation1 [shape = 'u32[72,128]{1,0:T(1,128)}', space=vmem, size = 0x9000, scoped, tag = 'internal scratch']
  #allocation2 [shape = 'f32[1]{0:T(128)S(6)}', space=smem, size = 0x200, scoped, tag = 'scoped memory for tpu_custom_call.1']
  %s0 = inlined_call_operand.<no memory space> [shape: f32[1], index: 0, kind: input, shape index: {}]
  %s1 = inlined_call_operand.hbm [shape: f32[75,512], index: 1, kind: input, shape index: {}]
  %s2 = inlined_call_operand.hbm [shape: f32[75,512], index: 2, kind: output, shape index: {}]
  %s3 = sld [smem:[#allocation0]]
  $region45: #{tpu_custom_call.1} parent=0
    _
  %s5 = ssub.s32 1, %s3
  %s6 = scalar_select 0, %s5, %s3
  %7 = sst [smem:[#allocation2]] %s0
  $region1: #{tpu_custom_call.1} parent=0
    #allocation3 [shape = 'u8[32768]{0}', space=vmem, size = 0x8000, scoped, tag = 'input window, operand 1']
    #allocation4 [shape = 's32[2]{0}', space=sflag, size = 0x8, scoped, tag = 'scoped memory for tpu_custom_call.1']
    #allocation5 [shape = 's32[2]{0}', space=sflag, size = 0x8, scoped, tag = 'scoped memory for tpu_custom_call.1']
    #allocation6 [shape = 'u8[32768]{0}', space=vmem, size = 0x8000, scoped, tag = 'output window, operand 0']
    %8 = vsyncpa [#allocation4], 0
    %s9 = scalar_lea.sflag [#allocation4], 1
    %10 = vsyncpa %s9, 0
    %11 = vsyncpa [#allocation5], 0
    %s12 = scalar_lea.sflag [#allocation5], 1
    %13 = vsyncpa %s12, 0
    loop: start=0, step=1, limit=12
    $region2: #{tpu_custom_call.1} parent=1 // loop_pre_header
      _
    $region3: #{tpu_custom_call.1} parent=1 // loop_header
      %s15 = sphi 0, %s19
      %p16 = scmp.ge.s32.totalorder %s15, 12
      %s23 = sphi 0, %s23
      %s25 = sphi 0, %s23
      %s26 = sphi 0, %s25
      %s40 = sphi 0, %s26
      %s46 = sphi 0, %s48
      %s49 = sphi 0, %s46
      %s50 = sphi 0, %s49
      %s66 = sphi 0, %s50
      %s72 = sphi 0, %s74
      %s75 = sphi 0, %s72
      %s76 = sphi 0, %s75
      %s92 = sphi 0, %s76
    $region4: #{tpu_custom_call.1} parent=1 // loop_header_branch
      %18 = sbr.rel (%p16) target = $region8
    $region5: #{tpu_custom_call.1} parent=1 // loop_body
      %s20 = ssub.s32 %s15, 1
      %s21 = ssub.s32 %s15, 2
      %s22 = sadd.s32 %s15, 1
      %s24 = sadd.s32 %s23, 1
      %p27 = scmp.eq.s32.totalorder %s15, 9
      %p28 = scmp.ne.s32.totalorder %s23, %s25
      %p29 = scmp.eq.s32.totalorder %s15, 0
      %p30 = por %p28, %p29
      %p31 = scmp.ne.s32.totalorder %s23, %s25
      %p32 = scmp.eq.s32.totalorder %s20, 9
      %p33 = por %p31, %p32
      %p34 = scmp.ne.s32.totalorder %s25, %s26
      %p35 = scmp.eq.s32.totalorder %s20, 0
      %p36 = por %p34, %p35
      %p37 = scmp.ne.s32.totalorder %s25, %s26
      %p38 = scmp.eq.s32.totalorder %s21, 9
      %p39 = por %p37, %p38
      %p41 = scmp.ne.s32.totalorder %s26, %s40
      %p42 = scmp.eq.s32.totalorder %s21, 0
      %p43 = por %p41, %p42
      %s44 = ssub.s32 %s15, %s22
      %p45 = scmp.eq.s32.totalorder %s44, 0
      %s47 = sadd.s32 %s46, 1
      %s48 = scalar_select %p45, %s46, %s47
      %p51 = pneg %p45
      %p52 = scmp.eq.s32.totalorder %s15, 9
      %p53 = por %p51, %p52
      %p54 = scmp.ne.s32.totalorder %s46, %s49
      %p55 = scmp.eq.s32.totalorder %s15, 0
      %p56 = por %p54, %p55
      %p57 = scmp.ne.s32.totalorder %s46, %s49
      %p58 = scmp.eq.s32.totalorder %s20, 9
      %p59 = por %p57, %p58
      %p60 = scmp.ne.s32.totalorder %s49, %s50
      %p61 = scmp.eq.s32.totalorder %s20, 0
      %p62 = por %p60, %p61
      %p63 = scmp.ne.s32.totalorder %s49, %s50
      %p64 = scmp.eq.s32.totalorder %s21, 9
      %p65 = por %p63, %p64
      %p67 = scmp.ne.s32.totalorder %s50, %s66
      %p68 = scmp.eq.s32.totalorder %s21, 0
      %p69 = por %p67, %p68
      %s70 = ssub.s32 %s15, %s22
      %p71 = scmp.eq.s32.totalorder %s70, 0
      %s73 = sadd.s32 %s72, 1
      %s74 = scalar_select %p71, %s72, %s73
      %p77 = pneg %p71
      %p78 = scmp.eq.s32.totalorder %s15, 9
      %p79 = por %p77, %p78
      %p80 = scmp.ne.s32.totalorder %s72, %s75
      %p81 = scmp.eq.s32.totalorder %s15, 0
      %p82 = por %p80, %p81
      %p83 = scmp.ne.s32.totalorder %s72, %s75
      %p84 = scmp.eq.s32.totalorder %s20, 9
      %p85 = por %p83, %p84
      %p86 = scmp.ne.s32.totalorder %s75, %s76
      %p87 = scmp.eq.s32.totalorder %s20, 0
      %p88 = por %p86, %p87
      %p89 = scmp.ne.s32.totalorder %s75, %s76
      %p90 = scmp.eq.s32.totalorder %s21, 9
      %p91 = por %p89, %p90
      %p93 = scmp.ne.s32.totalorder %s76, %s92
      %p94 = scmp.eq.s32.totalorder %s21, 0
      %p95 = por %p93, %p94
      %p96 = scmp.le.s32.totalorder 1, %s15
      %p97 = scmp.lt.s32.totalorder %s15, 11
      %p98 = pnand %p96, %p97
      %p99 = pneg %p98
      // Predicated region
      $region9: #{tpu_custom_call.1} parent=5 // pred_check
        _
      $region10: #{tpu_custom_call.1} parent=5 // pred_check_branch
        %101 = sbr.rel (%p98) target = $region12
      $region11: #{tpu_custom_call.1} parent=5 // pred_region
        %s102 = ssub.s32 %s15, 1
        // Predicated region
        $region13: #{tpu_custom_call.1} parent=11 // pred_check
          %p103 = pneg %p36
        $region14: #{tpu_custom_call.1} parent=11 // pred_check_branch
          %105 = sbr.rel (%p103) target = $region16
        $region15: #{tpu_custom_call.1} parent=11 // pred_region
          _
        $region16: #{tpu_custom_call.1} parent=11 // pred_fallthru
          _
      $region12: #{tpu_custom_call.1} parent=5 // pred_fallthru
        _
      %p106 = scmp.lt.s32.totalorder %s15, 10
      // Predicated region
      $region17: #{tpu_custom_call.1} parent=5 // pred_check
        %p107 = pneg %p106
      $region18: #{tpu_custom_call.1} parent=5 // pred_check_branch
        %109 = sbr.rel (%p107) target = $region20
      $region19: #{tpu_custom_call.1} parent=5 // pred_region
        // Predicated region
        $region21: #{tpu_custom_call.1} parent=19 // pred_check
          %p110 = pneg %p56
        $region22: #{tpu_custom_call.1} parent=19 // pred_check_branch
          %112 = sbr.rel (%p110) target = $region24
        $region23: #{tpu_custom_call.1} parent=19 // pred_region
          %s113 = sand.u32 %s46, 1
          %s114 = scalar_lea.sflag [#allocation4], %s113
          %s115 = sand.u32 %s46, 1
          %s116 = smul.addr %s115, 32
          %s117 = scalar_lea.vmem [#allocation3], %s116
          %119 = vsyncadd %s114, 0
          %s120 = smul.addr %s15, 4
          %s121 = smul.addr %s120, 8
          %s122 = scalar_lea.hbm %s1, %s121
          %s124 = sshll.u32 %s122, 4
          %s125 = int_to_ptr.hbm [resolvable:$true] %s124
          %s126 = sshll.u32 %s117, 4
          %s127 = int_to_ptr.vmem [resolvable:$true] %s126
          %129 = dma.hbm_to_vmem [thread:$0]  %s125, 512, %s127, %s114
        $region24: #{tpu_custom_call.1} parent=19 // pred_fallthru
          _
      $region20: #{tpu_custom_call.1} parent=5 // pred_fallthru
        _
      %p130 = scmp.le.s32.totalorder 1, %s15
      %p131 = scmp.lt.s32.totalorder %s15, 11
      %p132 = pnand %p130, %p131
      %p133 = pneg %p132
      // Predicated region
      $region25: #{tpu_custom_call.1} parent=5 // pred_check
        _
      $region26: #{tpu_custom_call.1} parent=5 // pred_check_branch
        %135 = sbr.rel (%p132) target = $region28
      $region27: #{tpu_custom_call.1} parent=5 // pred_region
        %s136 = ssub.s32 %s15, 1
        %s137 = sand.u32 %s49, 1
        %s138 = scalar_lea.sflag [#allocation4], %s137
        %s139 = sand.u32 %s49, 1
        %s140 = smul.addr %s139, 32
        %s141 = scalar_lea.vmem [#allocation3], %s140
        // Predicated region
        $region29: #{tpu_custom_call.1} parent=27 // pred_check
          %p142 = pneg %p62
        $region30: #{tpu_custom_call.1} parent=27 // pred_check_branch
          %144 = sbr.rel (%p142) target = $region32
        $region31: #{tpu_custom_call.1} parent=27 // pred_region
          %146 = dma.done %s138, 512
        $region32: #{tpu_custom_call.1} parent=27 // pred_fallthru
          _
        %p147 = pneg %p36
        %p148 = pneg %p33
        %s149 = sand.u32 %s49, 1
        %s150 = scalar_lea.sflag [#allocation4], %s149
        %s151 = sand.u32 %s49, 1
        %s152 = smul.addr %s151, 32
        %s153 = scalar_lea.vmem [#allocation3], %s152
        %p154 = pneg %p62
        %p155 = pneg %p59
        %p156 = pneg %p88
        %p157 = pneg %p85
        %s158 = sand.u32 %s75, 1
        %s159 = scalar_lea.sflag [#allocation5], %s158
        %s160 = sand.u32 %s75, 1
        %s161 = smul.addr %s160, 32
        %s162 = scalar_lea.vmem [#allocation6], %s161
        %v163 = vld [vmem:[%s141] sm:$0xff]
        %v164 = vld [vmem:[%s141 + $0x8] sm:$0xff]
        %v165 = vld [vmem:[%s141 + $0x10] sm:$0xff]
        %v166 = vld [vmem:[%s141 + $0x18] sm:$0xff]
        %s167 = sld [smem:[#allocation2]]
        %v168 = vstv %s167
        %v169 = vadd.f32 %v163, %v168
        %v170 = vadd.f32 %v164, %v168
        %v171 = vadd.f32 %v165, %v168
        %v172 = vadd.f32 %v166, %v168
        %173 = vst [vmem:[%s162] sm:$0xff] %v169
        %174 = vst [vmem:[%s162 + $0x8] sm:$0xff] %v170
        %175 = vst [vmem:[%s162 + $0x10] sm:$0xff] %v171
        %176 = vst [vmem:[%s162 + $0x18] sm:$0xff] %v172
        %s177 = sand.u32 %s75, 1
        %s178 = scalar_lea.sflag [#allocation5], %s177
        %s179 = sand.u32 %s75, 1
        %s180 = smul.addr %s179, 32
        %s181 = scalar_lea.vmem [#allocation6], %s180
        // Predicated region
        $region33: #{tpu_custom_call.1} parent=27 // pred_check
          %p182 = pneg %p85
        $region34: #{tpu_custom_call.1} parent=27 // pred_check_branch
          %184 = sbr.rel (%p182) target = $region36
        $region35: #{tpu_custom_call.1} parent=27 // pred_region
          %186 = vsyncadd %s178, 0
          %s187 = smul.addr %s20, 4
          %s188 = smul.addr %s187, 8
          %s189 = scalar_lea.hbm %s2, %s188
          %s191 = sshll.u32 %s181, 4
          %s192 = int_to_ptr.vmem [resolvable:$true] %s191
          %s193 = sshll.u32 %s189, 4
          %s194 = int_to_ptr.hbm [resolvable:$true] %s193
          %196 = dma.vmem_to_hbm [thread:$0]  %s192, 512, %s194, %s178
        $region36: #{tpu_custom_call.1} parent=27 // pred_fallthru
          _
      $region28: #{tpu_custom_call.1} parent=5 // pred_fallthru
        _
      %p197 = scmp.le.s32.totalorder 2, %s15
      // Predicated region
      $region37: #{tpu_custom_call.1} parent=5 // pred_check
        %p198 = pneg %p197
      $region38: #{tpu_custom_call.1} parent=5 // pred_check_branch
        %200 = sbr.rel (%p198) target = $region40
      $region39: #{tpu_custom_call.1} parent=5 // pred_region
        %s201 = ssub.s32 %s15, 2
        // Predicated region
        $region41: #{tpu_custom_call.1} parent=39 // pred_check
          %p202 = pneg %p91
        $region42: #{tpu_custom_call.1} parent=39 // pred_check_branch
          %204 = sbr.rel (%p202) target = $region44
        $region43: #{tpu_custom_call.1} parent=39 // pred_region
          %s205 = sand.u32 %s76, 1
          %s206 = scalar_lea.sflag [#allocation5], %s205
          %s207 = sand.u32 %s76, 1
          %s208 = smul.addr %s207, 32
          %s209 = scalar_lea.vmem [#allocation6], %s208
          %211 = dma.done %s206, 512
        $region44: #{tpu_custom_call.1} parent=39 // pred_fallthru
          _
      $region40: #{tpu_custom_call.1} parent=5 // pred_fallthru
        _
    $region6: #{tpu_custom_call.1} parent=1 // loop_footer
      %s19 = sadd.s32 1, %s15
    $region7: #{tpu_custom_call.1} parent=1 // loop_footer_branch
      %14 = sbr.rel target = $region3
    $region8: #{tpu_custom_call.1} parent=1 // loop_exit
      _
    %212 = vsyncpa [#allocation4], 1
    %s213 = scalar_lea.sflag [#allocation4], 1
    %214 = vsyncpa %s213, 1
    %215 = vsyncpa [#allocation5], 1
    %s216 = scalar_lea.sflag [#allocation5], 1
    %217 = vsyncpa %s216, 1

</llo_original>
